<compile_context>
chip_gen: v7x
topology: tpu7x:2x2x1
jax: 0.10.0
libtpu: 0.0.40
codegen_flags: <defaults>
</compile_context>

<pallas_src>
import functools

import jax
import jax.numpy as jnp
from jax import lax
from jax.experimental import pallas as pl
from jax.experimental.pallas import tpu as pltpu


def _flash_attend_kernel(*refs, causal, has_mask, has_attn_mask, scale,
                         nq, nk, block_q, block_k):
    refs = list(refs)
    q_ref = refs.pop(0)
    k_ref = refs.pop(0)
    v_ref = refs.pop(0)
    mask_ref = refs.pop(0) if has_mask else None        # (1, block_k) int32
    amask_ref = refs.pop(0) if has_attn_mask else None  # (block_q, block_k) int32
    o_ref, m_scr, l_scr, acc_scr = refs

    qi = pl.program_id(2)
    kv = pl.program_id(3)

    @pl.when(kv == 0)
    def _init():
        m_scr[...] = jnp.full_like(m_scr, -jnp.inf)
        l_scr[...] = jnp.zeros_like(l_scr)
        acc_scr[...] = jnp.zeros_like(acc_scr)

    neg = jnp.float32(-jnp.finfo(jnp.float32).max)

    def _compute(apply_causal):
        # Fold 1/sqrt(D) into the (block_q, D) q tile (cheaper than scaling scores).
        q = q_ref[...] * jnp.asarray(scale, dtype=q_ref.dtype)
        # q @ k^T expressed as a direct contraction over D (no materialized transpose).
        s = lax.dot_general(q, k_ref[...], (((1,), (1,)), ((), ())),
                            preferred_element_type=jnp.float32)

        if apply_causal:
            row = lax.broadcasted_iota(jnp.int32, s.shape, 0) + qi * block_q
            col = lax.broadcasted_iota(jnp.int32, s.shape, 1) + kv * block_k
            # torch: ones((i,j)).triu(j - i + 1)  <=>  col - row > nk - nq
            s = jnp.where((col - row) > (nk - nq), neg, s)
        if has_mask:
            s = jnp.where(mask_ref[...] != 0, s, neg)      # (1, bk) broadcast over rows
        if has_attn_mask:
            s = jnp.where(amask_ref[...] != 0, s, neg)

        m_prev = m_scr[...]
        m_new = jnp.maximum(m_prev, s.max(axis=-1, keepdims=True))
        alpha = jnp.exp(m_prev - m_new)
        p = jnp.exp(s - m_new)
        l_scr[...] = alpha * l_scr[...] + p.sum(axis=-1, keepdims=True)
        acc_scr[...] = alpha * acc_scr[...] + jnp.dot(
            p.astype(v_ref.dtype), v_ref[...], preferred_element_type=jnp.float32)
        m_scr[...] = m_new

    if causal:
        # max(col) - min(row) over the tile -> tile is entirely below the diagonal
        fully_unmasked = ((kv + 1) * block_k - 1 - qi * block_q) <= (nk - nq)
        # min(col) - max(row) over the tile -> tile has at least one visible entry
        not_fully_masked = (kv * block_k - (qi * block_q + block_q - 1)) <= (nk - nq)
        # Tiles entirely above the diagonal are skipped (~2x compute win for Nq == Nk).
        # NOTE: for the degenerate case of a row with *every* key masked, skipped tiles are
        # excluded from the uniform fallback (reference spreads it over all keys).
        pl.when(jnp.logical_and(not_fully_masked, jnp.logical_not(fully_unmasked)))(
            functools.partial(_compute, apply_causal=True))
        # Tiles entirely below the diagonal need no causal iota/where work at all.
        pl.when(fully_unmasked)(functools.partial(_compute, apply_causal=False))
    else:
        _compute(apply_causal=False)

    @pl.when(kv == pl.num_programs(3) - 1)
    def _finalize():
        inv_l = pl.reciprocal(l_scr[...], approx=True)   # EUP slot, frees the VPU divide
        o_ref[...] = (acc_scr[...] * inv_l).astype(o_ref.dtype)
    # TODO(synk): attention dropout omitted (eval-mode semantics, dropout_p treated as 0.0)


def attend(q, k, v, mask=None, attn_mask=None, *, causal=False,
           block_q=128, block_k=128, compute_dtype=None,
           vmem_limit_bytes=32 * 1024 * 1024):
    """Pallas equivalent of Attend.forward (non-flash path, eval mode)."""
    B, H, Nq, D = q.shape
    Nk = k.shape[-2]
    out_dtype = q.dtype

    if compute_dtype is not None:
        q = q.astype(compute_dtype)
        k = k.astype(compute_dtype)
        v = v.astype(compute_dtype)

    block_q = min(block_q, Nq)
    block_k = min(block_k, Nk)
    assert Nq % block_q == 0 and Nk % block_k == 0, "sequence lengths must divide block sizes"
    num_q = Nq // block_q
    num_k = Nk // block_k

    # Split user masks into (a) a tiny [B, Nk] key-padding vector broadcast in-kernel and
    # (b) an optional full attention mask that is only materialized when supplied.
    kp_mask = None
    extra = []
    if mask is not None:
        if mask.ndim == 2:
            kp_mask = mask
        elif mask.ndim == 4 and mask.shape[1] == 1 and mask.shape[-2] == 1:
            kp_mask = mask[:, 0, 0, :]
        else:
            extra.append(mask)
    if attn_mask is not None:
        extra.append(attn_mask)
    full_mask = None
    if extra:
        fm = extra[0].astype(bool)
        for m_ in extra[1:]:
            fm = fm & m_.astype(bool)
        # TODO(synk): pack the user-supplied attn_mask to int8 to further cut DMA bytes.
        full_mask = jnp.broadcast_to(fm, (B, H, Nq, Nk)).astype(jnp.int32)
    if kp_mask is not None:
        kp_mask = jnp.broadcast_to(kp_mask, (B, Nk)).astype(jnp.int32)[:, None, :]

    has_mask = kp_mask is not None
    has_attn_mask = full_mask is not None

    in_specs = [
        pl.BlockSpec((None, None, block_q, D), lambda b, h, i, j: (b, h, i, 0)),
        pl.BlockSpec((None, None, block_k, D), lambda b, h, i, j: (b, h, j, 0)),
        pl.BlockSpec((None, None, block_k, D), lambda b, h, i, j: (b, h, j, 0)),
    ]
    args = [q, k, v]
    if has_mask:
        in_specs.append(pl.BlockSpec((None, 1, block_k), lambda b, h, i, j: (b, 0, j)))
        args.append(kp_mask)
    if has_attn_mask:
        in_specs.append(pl.BlockSpec((None, None, block_q, block_k),
                                     lambda b, h, i, j: (b, h, i, j)))
        args.append(full_mask)

    kernel = functools.partial(
        _flash_attend_kernel, causal=causal, has_mask=has_mask,
        has_attn_mask=has_attn_mask, scale=float(D) ** -0.5,
        nq=Nq, nk=Nk, block_q=block_q, block_k=block_k)

    # TODO(synk): lane-dense [B, Nq, H*D] output packing for D < 128 not implemented.
    out = pl.pallas_call(
        kernel,
        out_shape=jax.ShapeDtypeStruct((B, H, Nq, D), out_dtype),
        grid_spec=pltpu.PrefetchScalarGridSpec(
            num_scalar_prefetch=0,
            grid=(B, H, num_q, num_k),
            in_specs=in_specs,
            out_specs=pl.BlockSpec((None, None, block_q, D),
                                   lambda b, h, i, j: (b, h, i, 0)),
            scratch_shapes=[
                pltpu.VMEM((block_q, 1), jnp.float32),   # running max m
                pltpu.VMEM((block_q, 1), jnp.float32),   # running denom l
                pltpu.VMEM((block_q, D), jnp.float32),   # output accumulator
            ],
        ),
        compiler_params=pltpu.CompilerParams(
            dimension_semantics=("parallel", "parallel", "parallel", "arbitrary"),
            vmem_limit_bytes=vmem_limit_bytes,
        ),
    )(*args)
    return out


def _attend_reference(q, k, v, mask=None, attn_mask=None, *, causal=False):
    """Pure-JAX reference mirroring the PyTorch forward (eval mode), in f32."""
    q = q.astype(jnp.float32)
    k = k.astype(jnp.float32)
    v = v.astype(jnp.float32)
    scale = q.shape[-1] ** -0.5
    if mask is not None and mask.ndim != 4:
        mask = mask[:, None, None, :]
    sim = jnp.einsum("bhid,bhjd->bhij", q, k) * scale
    neg_max = -jnp.finfo(sim.dtype).max
    if causal:
        i, j = sim.shape[-2:]
        row = jnp.arange(i)[:, None]
        col = jnp.arange(j)[None, :]
        causal_mask = (col - row) > (j - i)
        sim = jnp.where(causal_mask, neg_max, sim)
    if mask is not None:
        sim = jnp.where(mask, sim, neg_max)
    if attn_mask is not None:
        sim = jnp.where(attn_mask, sim, neg_max)
    attn = jax.nn.softmax(sim, axis=-1)
    return jnp.einsum("bhij,bhjd->bhid", attn, v)


if __name__ == "__main__":
    key = jax.random.PRNGKey(0)
    kq, kk, kvv, km, ka, kq2, kk2, kv2, km2 = jax.random.split(key, 9)

    # --- test 1: small shapes, causal, key-padding mask, f32 ---
    B, H, N, D = 2, 4, 8, 32
    q = jax.random.normal(kq, (B, H, N, D), dtype=jnp.float32)
    k = jax.random.normal(kk, (B, H, N, D), dtype=jnp.float32)
    v = jax.random.normal(kvv, (B, H, N, D), dtype=jnp.float32)
    mask = jax.random.bernoulli(km, 0.8, (B, N)).at[:, 0].set(True)

    out = jax.block_until_ready(attend(q, k, v, mask=mask, causal=True))
    ref = _attend_reference(q, k, v, mask=mask, causal=True)
    assert out.shape == (B, H, N, D)
    assert jnp.allclose(out, ref, atol=2e-2, rtol=2e-2), "test1 mismatch vs reference"

    # --- test 2: non-causal, key-padding mask + user-supplied attn_mask ---
    attn_mask = jax.random.bernoulli(ka, 0.9, (B, H, N, N))
    out2 = jax.block_until_ready(
        attend(q, k, v, mask=mask, attn_mask=attn_mask, causal=False))
    ref2 = _attend_reference(q, k, v, mask=mask, attn_mask=attn_mask, causal=False)
    assert jnp.allclose(out2, ref2, atol=2e-2, rtol=2e-2), "test2 mismatch vs reference"

    # --- test 3: multi-tile flash path (online softmax + 3-regime causal tiles), f32 ---
    B3, H3, N3, D3 = 1, 2, 256, 64
    q3 = jax.random.normal(kq2, (B3, H3, N3, D3), dtype=jnp.float32)
    k3 = jax.random.normal(kk2, (B3, H3, N3, D3), dtype=jnp.float32)
    v3 = jax.random.normal(kv2, (B3, H3, N3, D3), dtype=jnp.float32)
    mask3 = jax.random.bernoulli(km2, 0.9, (B3, N3)).at[:, 0].set(True)
    out3 = jax.block_until_ready(
        attend(q3, k3, v3, mask=mask3, causal=True, block_q=128, block_k=128))
    ref3 = _attend_reference(q3, k3, v3, mask=mask3, causal=True)
    assert jnp.allclose(out3, ref3, atol=2e-2, rtol=2e-2), "test3 mismatch vs reference"

    # --- test 4: bf16 compute path (MXU-friendly inputs, f32 accumulation) ---
    out4 = jax.block_until_ready(
        attend(q3, k3, v3, mask=mask3, causal=True, compute_dtype=jnp.bfloat16))
    assert jnp.allclose(out4.astype(jnp.float32), ref3, atol=8e-2, rtol=8e-2), \
        "test4 (bf16) mismatch vs reference"

    print("KERNEL_OK")
</pallas_src>

<mosaic_0001>
module attributes {stable_mosaic.version = 11 : i64} {
  func.func @_flash_attend_kernel(%arg0: i32, %arg1: i32, %arg2: i32, %arg3: i32, %arg4: memref<1x1x8x32xf32, #tpu.memory_space<vmem>>, %arg5: memref<1x1x8x32xf32, #tpu.memory_space<vmem>>, %arg6: memref<1x1x8x32xf32, #tpu.memory_space<vmem>>, %arg7: memref<1x1x8xi32, #tpu.memory_space<vmem>>, %arg8: memref<1x1x8x32xf32, #tpu.memory_space<vmem>>, %arg9: memref<8x1xf32, #tpu.memory_space<vmem>>, %arg10: memref<8x1xf32, #tpu.memory_space<vmem>>, %arg11: memref<8x32xf32, #tpu.memory_space<vmem>>) attributes {dimension_semantics = [#tpu.dimension_semantics<parallel>, #tpu.dimension_semantics<parallel>, #tpu.dimension_semantics<parallel>, #tpu.dimension_semantics<arbitrary>], iteration_bounds = array<i64: 2, 4, 1, 1>, scalar_prefetch = 0 : i64, scratch_operands = 3 : i64, tpu.core_type = #tpu.core_type<tc>, window_params = [{transform_indices = @transform_0, window_bounds = array<i64: 1, 1, 8, 32>}, {transform_indices = @transform_1, window_bounds = array<i64: 1, 1, 8, 32>}, {transform_indices = @transform_2, window_bounds = array<i64: 1, 1, 8, 32>}, {transform_indices = @transform_3, window_bounds = array<i64: 1, 1, 8>}, {transform_indices = @transform_4, window_bounds = array<i64: 1, 1, 8, 32>}]} {
    %c0_i32 = arith.constant 0 : i32
    %0 = arith.cmpi eq, %arg3, %c0_i32 : i32
    %1 = arith.extui %0 : i1 to i32
    %c0_i32_0 = arith.constant 0 : i32
    %2 = arith.cmpi ne, %1, %c0_i32_0 : i32
    scf.if %2 {
      %cst_14 = arith.constant 0xFF800000 : f32
      %24 = vector.broadcast %cst_14 : f32 to vector<8x1xf32>
      %c0 = arith.constant 0 : index
      %c0_15 = arith.constant 0 : index
      %25 = vector.load %arg9[%c0, %c0_15] : memref<8x1xf32, #tpu.memory_space<vmem>>, vector<8x1xf32>
      tpu.vector_store %arg9[%c0, %c0_15], %24 {strides = array<i32>} : memref<8x1xf32, #tpu.memory_space<vmem>>, vector<8x1xf32>,
      %cst_16 = arith.constant 0.000000e+00 : f32
      %26 = vector.broadcast %cst_16 : f32 to vector<8x1xf32>
      %c0_17 = arith.constant 0 : index
      %c0_18 = arith.constant 0 : index
      %27 = vector.load %arg10[%c0_17, %c0_18] : memref<8x1xf32, #tpu.memory_space<vmem>>, vector<8x1xf32>
      tpu.vector_store %arg10[%c0_17, %c0_18], %26 {strides = array<i32>} : memref<8x1xf32, #tpu.memory_space<vmem>>, vector<8x1xf32>,
      %cst_19 = arith.constant 0.000000e+00 : f32
      %28 = vector.broadcast %cst_19 : f32 to vector<8x32xf32>
      %c0_20 = arith.constant 0 : index
      %c0_21 = arith.constant 0 : index
      %29 = vector.load %arg11[%c0_20, %c0_21] : memref<8x32xf32, #tpu.memory_space<vmem>>, vector<8x32xf32>
      tpu.vector_store %arg11[%c0_20, %c0_21], %28 {strides = array<i32>} : memref<8x32xf32, #tpu.memory_space<vmem>>, vector<8x32xf32>,
    } else {
    }
    %c1_i32 = arith.constant 1 : i32
    %3 = arith.addi %arg3, %c1_i32 : i32
    %c8_i32 = arith.constant 8 : i32
    %4 = arith.muli %3, %c8_i32 : i32
    %c1_i32_1 = arith.constant 1 : i32
    %5 = arith.subi %4, %c1_i32_1 : i32
    %c8_i32_2 = arith.constant 8 : i32
    %6 = arith.muli %arg2, %c8_i32_2 : i32
    %7 = arith.subi %5, %6 : i32
    %c0_i32_3 = arith.constant 0 : i32
    %8 = arith.cmpi sle, %7, %c0_i32_3 : i32
    %c8_i32_4 = arith.constant 8 : i32
    %9 = arith.muli %arg3, %c8_i32_4 : i32
    %c8_i32_5 = arith.constant 8 : i32
    %10 = arith.muli %arg2, %c8_i32_5 : i32
    %c8_i32_6 = arith.constant 8 : i32
    %11 = arith.addi %10, %c8_i32_6 : i32
    %c1_i32_7 = arith.constant 1 : i32
    %12 = arith.subi %11, %c1_i32_7 : i32
    %13 = arith.subi %9, %12 : i32
    %c0_i32_8 = arith.constant 0 : i32
    %14 = arith.cmpi sle, %13, %c0_i32_8 : i32
    %true = arith.constant true
    %15 = arith.xori %8, %true : i1
    %16 = arith.andi %14, %15 : i1
    %17 = arith.extui %16 : i1 to i32
    %cst = arith.constant -3.40282347E+38 : f32
    %c0_i32_9 = arith.constant 0 : i32
    %18 = arith.cmpi ne, %17, %c0_i32_9 : i32
    scf.if %18 {
      %c0 = arith.constant 0 : index
      %c0_14 = arith.constant 0 : index
      %c0_15 = arith.constant 0 : index
      %c0_16 = arith.constant 0 : index
      %24 = vector.load %arg4[%c0, %c0_14, %c0_15, %c0_16] : memref<1x1x8x32xf32, #tpu.memory_space<vmem>>, vector<1x1x8x32xf32>
      %25 = vector.shape_cast %24 : vector<1x1x8x32xf32> to vector<8x32xf32>
      %cst_17 = arith.constant 0.176776692 : f32
      %26 = vector.broadcast %cst_17 : f32 to vector<8x32xf32>
      %27 = arith.mulf %25, %26 : vector<8x32xf32>
      %c0_18 = arith.constant 0 : index
      %c0_19 = arith.constant 0 : index
      %c0_20 = arith.constant 0 : index
      %c0_21 = arith.constant 0 : index
      %28 = vector.load %arg5[%c0_18, %c0_19, %c0_20, %c0_21] : memref<1x1x8x32xf32, #tpu.memory_space<vmem>>, vector<1x1x8x32xf32>
      %29 = vector.shape_cast %28 : vector<1x1x8x32xf32> to vector<8x32xf32>
      %cst_22 = arith.constant dense<0.000000e+00> : vector<8x8xf32>
      %30 = tpu.matmul %27, %29, %cst_22 {dimension_numbers = #tpu.dot_dimension_numbers<[1], [1], [0], [0], [0, 0, 1, 0], [], []>} : vector<8x32xf32>, vector<8x32xf32>, vector<8x8xf32> -> vector<8x8xf32>
      %31 = tpu.iota {dimensions = array<i32: 0>} : vector<8x8xi32>
      %c8_i32_23 = arith.constant 8 : i32
      %32 = arith.muli %arg2, %c8_i32_23 : i32
      %33 = vector.broadcast %32 : i32 to vector<8x8xi32>
      %34 = arith.addi %31, %33 : vector<8x8xi32>
      %35 = tpu.iota {dimensions = array<i32: 1>} : vector<8x8xi32>
      %c8_i32_24 = arith.constant 8 : i32
      %36 = arith.muli %arg3, %c8_i32_24 : i32
      %37 = vector.broadcast %36 : i32 to vector<8x8xi32>
      %38 = arith.addi %35, %37 : vector<8x8xi32>
      %39 = arith.subi %38, %34 : vector<8x8xi32>
      %c0_i32_25 = arith.constant 0 : i32
      %40 = vector.broadcast %c0_i32_25 : i32 to vector<8x8xi32>
      %41 = arith.cmpi sgt, %39, %40 : vector<8x8xi32>
      %42 = vector.broadcast %cst : f32 to vector<8x8xf32>
      %43 = arith.select %41, %42, %30 : vector<8x8xi1>, vector<8x8xf32>
      %c0_26 = arith.constant 0 : index
      %c0_27 = arith.constant 0 : index
      %c0_28 = arith.constant 0 : index
      %44 = vector.load %arg7[%c0_26, %c0_27, %c0_28] : memref<1x1x8xi32, #tpu.memory_space<vmem>>, vector<1x1x8xi32>
      %45 = vector.shape_cast %44 : vector<1x1x8xi32> to vector<1x8xi32>
      %c0_i32_29 = arith.constant 0 : i32
      %46 = vector.broadcast %c0_i32_29 : i32 to vector<1x8xi32>
      %47 = arith.cmpi ne, %45, %46 : vector<1x8xi32>
      %48 = vector.shape_cast %47 : vector<1x8xi1> to vector<1x8xi1>
      %49 = vector.broadcast %48 : vector<1x8xi1> to vector<8x8xi1>
      %50 = vector.broadcast %cst : f32 to vector<8x8xf32>
      %51 = arith.select %49, %43, %50 : vector<8x8xi1>, vector<8x8xf32>
      %c0_30 = arith.constant 0 : index
      %c0_31 = arith.constant 0 : index
      %52 = vector.load %arg9[%c0_30, %c0_31] : memref<8x1xf32, #tpu.memory_space<vmem>>, vector<8x1xf32>
      %cst_32 = arith.constant dense<0xFF800000> : vector<8xf32>
      %53 = vector.multi_reduction <maximumf>, %51, %cst_32 [1] : vector<8x8xf32> to vector<8xf32>
      %54 = vector.shape_cast %53 : vector<8xf32> to vector<8x1xf32>
      %55 = arith.maximumf %52, %54 : vector<8x1xf32>
      %56 = arith.subf %52, %55 : vector<8x1xf32>
      %57 = math.exp %56 : vector<8x1xf32>
      %58 = vector.broadcast %55 : vector<8x1xf32> to vector<8x8xf32>
      %59 = arith.subf %51, %58 : vector<8x8xf32>
      %60 = math.exp %59 : vector<8x8xf32>
      %c0_33 = arith.constant 0 : index
      %c0_34 = arith.constant 0 : index
      %61 = vector.load %arg10[%c0_33, %c0_34] : memref<8x1xf32, #tpu.memory_space<vmem>>, vector<8x1xf32>
      %62 = arith.mulf %57, %61 : vector<8x1xf32>
      %cst_35 = arith.constant dense<0.000000e+00> : vector<8xf32>
      %63 = vector.multi_reduction <add>, %60, %cst_35 [1] : vector<8x8xf32> to vector<8xf32>
      %64 = vector.shape_cast %63 : vector<8xf32> to vector<8x1xf32>
      %65 = arith.addf %62, %64 : vector<8x1xf32>
      %c0_36 = arith.constant 0 : index
      %c0_37 = arith.constant 0 : index
      %66 = vector.load %arg10[%c0_36, %c0_37] : memref<8x1xf32, #tpu.memory_space<vmem>>, vector<8x1xf32>
      tpu.vector_store %arg10[%c0_36, %c0_37], %65 {strides = array<i32>} : memref<8x1xf32, #tpu.memory_space<vmem>>, vector<8x1xf32>,
      %c0_38 = arith.constant 0 : index
      %c0_39 = arith.constant 0 : index
      %67 = vector.load %arg11[%c0_38, %c0_39] : memref<8x32xf32, #tpu.memory_space<vmem>>, vector<8x32xf32>
      %68 = vector.broadcast %57 : vector<8x1xf32> to vector<8x32xf32>
      %69 = arith.mulf %68, %67 : vector<8x32xf32>
      %c0_40 = arith.constant 0 : index
      %c0_41 = arith.constant 0 : index
      %c0_42 = arith.constant 0 : index
      %c0_43 = arith.constant 0 : index
      %70 = vector.load %arg6[%c0_40, %c0_41, %c0_42, %c0_43] : memref<1x1x8x32xf32, #tpu.memory_space<vmem>>, vector<1x1x8x32xf32>
      %71 = vector.shape_cast %70 : vector<1x1x8x32xf32> to vector<8x32xf32>
      %cst_44 = arith.constant dense<0.000000e+00> : vector<8x32xf32>
      %72 = tpu.matmul %60, %71, %cst_44 {dimension_numbers = #tpu.dot_dimension_numbers<[1], [0], [0], [1], [0, 0, 1, 1], [], []>} : vector<8x8xf32>, vector<8x32xf32>, vector<8x32xf32> -> vector<8x32xf32>
      %73 = arith.addf %69, %72 : vector<8x32xf32>
      %c0_45 = arith.constant 0 : index
      %c0_46 = arith.constant 0 : index
      %74 = vector.load %arg11[%c0_45, %c0_46] : memref<8x32xf32, #tpu.memory_space<vmem>>, vector<8x32xf32>
      tpu.vector_store %arg11[%c0_45, %c0_46], %73 {strides = array<i32>} : memref<8x32xf32, #tpu.memory_space<vmem>>, vector<8x32xf32>,
      %c0_47 = arith.constant 0 : index
      %c0_48 = arith.constant 0 : index
      %75 = vector.load %arg9[%c0_47, %c0_48] : memref<8x1xf32, #tpu.memory_space<vmem>>, vector<8x1xf32>
      tpu.vector_store %arg9[%c0_47, %c0_48], %55 {strides = array<i32>} : memref<8x1xf32, #tpu.memory_space<vmem>>, vector<8x1xf32>,
    } else {
    }
    %19 = arith.extui %8 : i1 to i32
    %cst_10 = arith.constant -3.40282347E+38 : f32
    %c0_i32_11 = arith.constant 0 : i32
    %20 = arith.cmpi ne, %19, %c0_i32_11 : i32
    scf.if %20 {
      %c0 = arith.constant 0 : index
      %c0_14 = arith.constant 0 : index
      %c0_15 = arith.constant 0 : index
      %c0_16 = arith.constant 0 : index
      %24 = vector.load %arg4[%c0, %c0_14, %c0_15, %c0_16] : memref<1x1x8x32xf32, #tpu.memory_space<vmem>>, vector<1x1x8x32xf32>
      %25 = vector.shape_cast %24 : vector<1x1x8x32xf32> to vector<8x32xf32>
      %cst_17 = arith.constant 0.176776692 : f32
      %26 = vector.broadcast %cst_17 : f32 to vector<8x32xf32>
      %27 = arith.mulf %25, %26 : vector<8x32xf32>
      %c0_18 = arith.constant 0 : index
      %c0_19 = arith.constant 0 : index
      %c0_20 = arith.constant 0 : index
      %c0_21 = arith.constant 0 : index
      %28 = vector.load %arg5[%c0_18, %c0_19, %c0_20, %c0_21] : memref<1x1x8x32xf32, #tpu.memory_space<vmem>>, vector<1x1x8x32xf32>
      %29 = vector.shape_cast %28 : vector<1x1x8x32xf32> to vector<8x32xf32>
      %cst_22 = arith.constant dense<0.000000e+00> : vector<8x8xf32>
      %30 = tpu.matmul %27, %29, %cst_22 {dimension_numbers = #tpu.dot_dimension_numbers<[1], [1], [0], [0], [0, 0, 1, 0], [], []>} : vector<8x32xf32>, vector<8x32xf32>, vector<8x8xf32> -> vector<8x8xf32>
      %c0_23 = arith.constant 0 : index
      %c0_24 = arith.constant 0 : index
      %c0_25 = arith.constant 0 : index
      %31 = vector.load %arg7[%c0_23, %c0_24, %c0_25] : memref<1x1x8xi32, #tpu.memory_space<vmem>>, vector<1x1x8xi32>
      %32 = vector.shape_cast %31 : vector<1x1x8xi32> to vector<1x8xi32>
      %c0_i32_26 = arith.constant 0 : i32
      %33 = vector.broadcast %c0_i32_26 : i32 to vector<1x8xi32>
      %34 = arith.cmpi ne, %32, %33 : vector<1x8xi32>
      %35 = vector.shape_cast %34 : vector<1x8xi1> to vector<1x8xi1>
      %36 = vector.broadcast %35 : vector<1x8xi1> to vector<8x8xi1>
      %37 = vector.broadcast %cst_10 : f32 to vector<8x8xf32>
      %38 = arith.select %36, %30, %37 : vector<8x8xi1>, vector<8x8xf32>
      %c0_27 = arith.constant 0 : index
      %c0_28 = arith.constant 0 : index
      %39 = vector.load %arg9[%c0_27, %c0_28] : memref<8x1xf32, #tpu.memory_space<vmem>>, vector<8x1xf32>
      %cst_29 = arith.constant dense<0xFF800000> : vector<8xf32>
      %40 = vector.multi_reduction <maximumf>, %38, %cst_29 [1] : vector<8x8xf32> to vector<8xf32>
      %41 = vector.shape_cast %40 : vector<8xf32> to vector<8x1xf32>
      %42 = arith.maximumf %39, %41 : vector<8x1xf32>
      %43 = arith.subf %39, %42 : vector<8x1xf32>
      %44 = math.exp %43 : vector<8x1xf32>
      %45 = vector.broadcast %42 : vector<8x1xf32> to vector<8x8xf32>
      %46 = arith.subf %38, %45 : vector<8x8xf32>
      %47 = math.exp %46 : vector<8x8xf32>
      %c0_30 = arith.constant 0 : index
      %c0_31 = arith.constant 0 : index
      %48 = vector.load %arg10[%c0_30, %c0_31] : memref<8x1xf32, #tpu.memory_space<vmem>>, vector<8x1xf32>
      %49 = arith.mulf %44, %48 : vector<8x1xf32>
      %cst_32 = arith.constant dense<0.000000e+00> : vector<8xf32>
      %50 = vector.multi_reduction <add>, %47, %cst_32 [1] : vector<8x8xf32> to vector<8xf32>
      %51 = vector.shape_cast %50 : vector<8xf32> to vector<8x1xf32>
      %52 = arith.addf %49, %51 : vector<8x1xf32>
      %c0_33 = arith.constant 0 : index
      %c0_34 = arith.constant 0 : index
      %53 = vector.load %arg10[%c0_33, %c0_34] : memref<8x1xf32, #tpu.memory_space<vmem>>, vector<8x1xf32>
      tpu.vector_store %arg10[%c0_33, %c0_34], %52 {strides = array<i32>} : memref<8x1xf32, #tpu.memory_space<vmem>>, vector<8x1xf32>,
      %c0_35 = arith.constant 0 : index
      %c0_36 = arith.constant 0 : index
      %54 = vector.load %arg11[%c0_35, %c0_36] : memref<8x32xf32, #tpu.memory_space<vmem>>, vector<8x32xf32>
      %55 = vector.broadcast %44 : vector<8x1xf32> to vector<8x32xf32>
      %56 = arith.mulf %55, %54 : vector<8x32xf32>
      %c0_37 = arith.constant 0 : index
      %c0_38 = arith.constant 0 : index
      %c0_39 = arith.constant 0 : index
      %c0_40 = arith.constant 0 : index
      %57 = vector.load %arg6[%c0_37, %c0_38, %c0_39, %c0_40] : memref<1x1x8x32xf32, #tpu.memory_space<vmem>>, vector<1x1x8x32xf32>
      %58 = vector.shape_cast %57 : vector<1x1x8x32xf32> to vector<8x32xf32>
      %cst_41 = arith.constant dense<0.000000e+00> : vector<8x32xf32>
      %59 = tpu.matmul %47, %58, %cst_41 {dimension_numbers = #tpu.dot_dimension_numbers<[1], [0], [0], [1], [0, 0, 1, 1], [], []>} : vector<8x8xf32>, vector<8x32xf32>, vector<8x32xf32> -> vector<8x32xf32>
      %60 = arith.addf %56, %59 : vector<8x32xf32>
      %c0_42 = arith.constant 0 : index
      %c0_43 = arith.constant 0 : index
      %61 = vector.load %arg11[%c0_42, %c0_43] : memref<8x32xf32, #tpu.memory_space<vmem>>, vector<8x32xf32>
      tpu.vector_store %arg11[%c0_42, %c0_43], %60 {strides = array<i32>} : memref<8x32xf32, #tpu.memory_space<vmem>>, vector<8x32xf32>,
      %c0_44 = arith.constant 0 : index
      %c0_45 = arith.constant 0 : index
      %62 = vector.load %arg9[%c0_44, %c0_45] : memref<8x1xf32, #tpu.memory_space<vmem>>, vector<8x1xf32>
      tpu.vector_store %arg9[%c0_44, %c0_45], %42 {strides = array<i32>} : memref<8x1xf32, #tpu.memory_space<vmem>>, vector<8x1xf32>,
    } else {
    }
    %c0_i32_12 = arith.constant 0 : i32
    %21 = arith.cmpi eq, %arg3, %c0_i32_12 : i32
    %22 = arith.extui %21 : i1 to i32
    %c0_i32_13 = arith.constant 0 : i32
    %23 = arith.cmpi ne, %22, %c0_i32_13 : i32
    scf.if %23 {
      %c0 = arith.constant 0 : index
      %c0_14 = arith.constant 0 : index
      %24 = vector.load %arg10[%c0, %c0_14] : memref<8x1xf32, #tpu.memory_space<vmem>>, vector<8x1xf32>
      %25 = tpu.reciprocal %24 {approx = true} : vector<8x1xf32> -> vector<8x1xf32>
      %c0_15 = arith.constant 0 : index
      %c0_16 = arith.constant 0 : index
      %26 = vector.load %arg11[%c0_15, %c0_16] : memref<8x32xf32, #tpu.memory_space<vmem>>, vector<8x32xf32>
      %27 = vector.broadcast %25 : vector<8x1xf32> to vector<8x32xf32>
      %28 = arith.mulf %26, %27 : vector<8x32xf32>
      %c0_17 = arith.constant 0 : index
      %c0_18 = arith.constant 0 : index
      %c0_19 = arith.constant 0 : index
      %c0_20 = arith.constant 0 : index
      %29 = vector.load %arg8[%c0_17, %c0_18, %c0_19, %c0_20] : memref<1x1x8x32xf32, #tpu.memory_space<vmem>>, vector<1x1x8x32xf32>
      %30 = vector.shape_cast %29 : vector<1x1x8x32xf32> to vector<8x32xf32>
      %31 = vector.shape_cast %28 : vector<8x32xf32> to vector<1x1x8x32xf32>
      tpu.vector_store %arg8[%c0_17, %c0_18, %c0_19, %c0_20], %31 {strides = array<i32>} : memref<1x1x8x32xf32, #tpu.memory_space<vmem>>, vector<1x1x8x32xf32>,
    } else {
    }
    return
  }
  func.func @transform_0(%arg0: i32, %arg1: i32, %arg2: i32, %arg3: i32) -> (i32, i32, i32, i32) {
    %c0_i32 = arith.constant 0 : i32
    %c0_i32_0 = arith.constant 0 : i32
    return %arg0, %arg1, %arg2, %c0_i32 : i32, i32, i32, i32
  }
  func.func @transform_1(%arg0: i32, %arg1: i32, %arg2: i32, %arg3: i32) -> (i32, i32, i32, i32) {
    %c0_i32 = arith.constant 0 : i32
    %c0_i32_0 = arith.constant 0 : i32
    return %arg0, %arg1, %arg3, %c0_i32 : i32, i32, i32, i32
  }
  func.func @transform_2(%arg0: i32, %arg1: i32, %arg2: i32, %arg3: i32) -> (i32, i32, i32, i32) {
    %c0_i32 = arith.constant 0 : i32
    %c0_i32_0 = arith.constant 0 : i32
    return %arg0, %arg1, %arg3, %c0_i32 : i32, i32, i32, i32
  }
  func.func @transform_3(%arg0: i32, %arg1: i32, %arg2: i32, %arg3: i32) -> (i32, i32, i32) {
    %c0_i32 = arith.constant 0 : i32
    %c0_i32_0 = arith.constant 0 : i32
    return %arg0, %c0_i32, %arg3 : i32, i32, i32
  }
  func.func @transform_4(%arg0: i32, %arg1: i32, %arg2: i32, %arg3: i32) -> (i32, i32, i32, i32) {
    %c0_i32 = arith.constant 0 : i32
    %c0_i32_0 = arith.constant 0 : i32
    return %arg0, %arg1, %arg2, %c0_i32 : i32, i32, i32, i32
  }
}

</mosaic_0001>

<llo_original>
// kernel: tpu_custom_call.1
$region0: #{tpu_custom_call.1}
  #allocation0 [shape = 'u32[]', space=smem, size = 0x4, offset = 0x4, fixed_abs, tag = 'smem constant byte address 0x4 - core index']
  #allocation1 [shape = 'u32[144,128]{1,0:T(1,128)}', space=vmem, size = 0x12000, scoped, tag = 'internal scratch']
  #allocation2 [shape = 'f32[8,1]{1,0:T(8,128)}', space=vmem, size = 0x1000, scoped, tag = 'scratch operand']
  #allocation3 [shape = 'f32[8,1]{1,0:T(8,128)}', space=vmem, size = 0x1000, scoped, tag = 'scratch operand']
  #allocation4 [shape = 'f32[8,32]{1,0:T(8,128)}', space=vmem, size = 0x1000, scoped, tag = 'scratch operand']
  %s0 = inlined_call_operand.hbm [shape: f32[2,4,8,32], index: 0, kind: input, shape index: {}]
  %s1 = inlined_call_operand.hbm [shape: f32[2,4,8,32], index: 1, kind: input, shape index: {}]
  %s2 = inlined_call_operand.hbm [shape: f32[2,4,8,32], index: 2, kind: input, shape index: {}]
  %s3 = inlined_call_operand.vmem [shape: s32[2,1,8], index: 3, kind: input, shape index: {}]
  %s4 = inlined_call_operand.hbm [shape: f32[2,4,8,32], index: 4, kind: output, shape index: {}]
  %s5 = sld [smem:[#allocation0]]
  $region77: #{tpu_custom_call.1} parent=0
    _
  %s7 = ssub.s32 1, %s5
  %s8 = scalar_select 0, %s7, %s5
  $region1: #{tpu_custom_call.1} parent=0
    #allocation5 [shape = 'u8[8192]{0}', space=vmem, size = 0x2000, scoped, tag = 'input window, operand 0']
    #allocation6 [shape = 's32[2]{0}', space=sflag, size = 0x8, scoped, tag = 'scoped memory for tpu_custom_call.1']
    #allocation7 [shape = 's32[2]{0}', space=sflag, size = 0x8, scoped, tag = 'scoped memory for tpu_custom_call.1']
    #allocation8 [shape = 'u8[8192]{0}', space=vmem, size = 0x2000, scoped, tag = 'input window, operand 1']
    #allocation9 [shape = 's32[2]{0}', space=sflag, size = 0x8, scoped, tag = 'scoped memory for tpu_custom_call.1']
    #allocation10 [shape = 'u8[8192]{0}', space=vmem, size = 0x2000, scoped, tag = 'input window, operand 2']
    #allocation11 [shape = 'u8[8192]{0}', space=vmem, size = 0x2000, scoped, tag = 'output window, operand 0']
    %9 = vsyncpa [#allocation6], 0
    %s10 = scalar_lea.sflag [#allocation6], 1
    %11 = vsyncpa %s10, 0
    %12 = vsyncpa [#allocation9], 0
    %s13 = scalar_lea.sflag [#allocation9], 1
    %14 = vsyncpa %s13, 0
    %15 = vsyncpa [#allocation7], 0
    %s16 = scalar_lea.sflag [#allocation7], 1
    %17 = vsyncpa %s16, 0
    loop: start=0, step=1, limit=10
    $region2: #{tpu_custom_call.1} parent=1 // loop_pre_header
      _
    $region3: #{tpu_custom_call.1} parent=1 // loop_header
      %s19 = sphi 0, %s23
      %p20 = scmp.ge.s32.totalorder %s19, 10
      %s26 = sphi 0, %s52
      %s27 = sphi 0, %s48
      %s28 = sphi 0, %s44
      %s29 = sphi 0, %s40
      %s30 = sphi 0, %s26
      %s31 = sphi 0, %s27
      %s32 = sphi 0, %s28
      %s33 = sphi 0, %s29
      %s34 = sphi 0, %s30
      %s35 = sphi 0, %s31
      %s36 = sphi 0, %s32
      %s37 = sphi 0, %s33
      %s59 = sphi 0, %s61
      %s62 = sphi 0, %s59
      %s63 = sphi 0, %s62
      %s79 = sphi 0, %s63
      %s89 = sphi 0, %s91
      %s92 = sphi 0, %s89
      %s93 = sphi 0, %s92
      %s109 = sphi 0, %s93
      %s119 = sphi 0, %s121
      %s122 = sphi 0, %s119
      %s123 = sphi 0, %s122
      %s139 = sphi 0, %s123
      %s147 = sphi 0, %s149
      %s150 = sphi 0, %s147
      %s151 = sphi 0, %s150
      %s167 = sphi 0, %s151
      %s177 = sphi 0, %s179
      %s180 = sphi 0, %s177
      %s181 = sphi 0, %s180
      %s197 = sphi 0, %s181
    $region4: #{tpu_custom_call.1} parent=1 // loop_header_branch
      %22 = sbr.rel (%p20) target = $region8
    $region5: #{tpu_custom_call.1} parent=1 // loop_body
      %s24 = ssub.s32 %s19, 1
      %s25 = ssub.s32 %s19, 2
      %s38 = sadd.s32 1, %s29
      %p39 = scmp.ge.s32.totalorder %s38, 1
      %s40 = scalar_select %p39, 0, %s38
      %s41 = sadd.s32 1, %s28
      %s42 = scalar_select %p39, %s41, %s28
      %p43 = scmp.ge.s32.totalorder %s42, 1
      %s44 = scalar_select %p43, 0, %s42
      %s45 = sadd.s32 1, %s27
      %s46 = scalar_select %p43, %s45, %s27
      %p47 = scmp.ge.s32.totalorder %s46, 4
      %s48 = scalar_select %p47, 0, %s46
      %s49 = sadd.s32 1, %s26
      %s50 = scalar_select %p47, %s49, %s26
      %p51 = scmp.ge.s32.totalorder %s50, 2
      %s52 = scalar_select %p51, 0, %s50
      %s53 = ssub.s32 %s26, %s52
      %s54 = ssub.s32 %s27, %s48
      %s55 = sor.u32 %s53, %s54
      %s56 = ssub.s32 %s28, %s44
      %s57 = sor.u32 %s55, %s56
      %p58 = scmp.eq.s32.totalorder %s57, 0
      %s60 = sadd.s32 %s59, 1
      %s61 = scalar_select %p58, %s59, %s60
      %p64 = pneg %p58
      %p65 = scmp.eq.s32.totalorder %s19, 7
      %p66 = por %p64, %p65
      %p67 = scmp.ne.s32.totalorder %s59, %s62
      %p68 = scmp.eq.s32.totalorder %s19, 0
      %p69 = por %p67, %p68
      %p70 = scmp.ne.s32.totalorder %s59, %s62
      %p71 = scmp.eq.s32.totalorder %s24, 7
      %p72 = por %p70, %p71
      %p73 = scmp.ne.s32.totalorder %s62, %s63
      %p74 = scmp.eq.s32.totalorder %s24, 0
      %p75 = por %p73, %p74
      %p76 = scmp.ne.s32.totalorder %s62, %s63
      %p77 = scmp.eq.s32.totalorder %s25, 7
      %p78 = por %p76, %p77
      %p80 = scmp.ne.s32.totalorder %s63, %s79
      %p81 = scmp.eq.s32.totalorder %s25, 0
      %p82 = por %p80, %p81
      %s83 = ssub.s32 %s26, %s52
      %s84 = ssub.s32 %s27, %s48
      %s85 = sor.u32 %s83, %s84
      %s86 = ssub.s32 %s29, %s40
      %s87 = sor.u32 %s85, %s86
      %p88 = scmp.eq.s32.totalorder %s87, 0
      %s90 = sadd.s32 %s89, 1
      %s91 = scalar_select %p88, %s89, %s90
      %p94 = pneg %p88
      %p95 = scmp.eq.s32.totalorder %s19, 7
      %p96 = por %p94, %p95
      %p97 = scmp.ne.s32.totalorder %s89, %s92
      %p98 = scmp.eq.s32.totalorder %s19, 0
      %p99 = por %p97, %p98
      %p100 = scmp.ne.s32.totalorder %s89, %s92
      %p101 = scmp.eq.s32.totalorder %s24, 7
      %p102 = por %p100, %p101
      %p103 = scmp.ne.s32.totalorder %s92, %s93
      %p104 = scmp.eq.s32.totalorder %s24, 0
      %p105 = por %p103, %p104
      %p106 = scmp.ne.s32.totalorder %s92, %s93
      %p107 = scmp.eq.s32.totalorder %s25, 7
      %p108 = por %p106, %p107
      %p110 = scmp.ne.s32.totalorder %s93, %s109
      %p111 = scmp.eq.s32.totalorder %s25, 0
      %p112 = por %p110, %p111
      %s113 = ssub.s32 %s26, %s52
      %s114 = ssub.s32 %s27, %s48
      %s115 = sor.u32 %s113, %s114
      %s116 = ssub.s32 %s29, %s40
      %s117 = sor.u32 %s115, %s116
      %p118 = scmp.eq.s32.totalorder %s117, 0
      %s120 = sadd.s32 %s119, 1
      %s121 = scalar_select %p118, %s119, %s120
      %p124 = pneg %p118
      %p125 = scmp.eq.s32.totalorder %s19, 7
      %p126 = por %p124, %p125
      %p127 = scmp.ne.s32.totalorder %s119, %s122
      %p128 = scmp.eq.s32.totalorder %s19, 0
      %p129 = por %p127, %p128
      %p130 = scmp.ne.s32.totalorder %s119, %s122
      %p131 = scmp.eq.s32.totalorder %s24, 7
      %p132 = por %p130, %p131
      %p133 = scmp.ne.s32.totalorder %s122, %s123
      %p134 = scmp.eq.s32.totalorder %s24, 0
      %p135 = por %p133, %p134
      %p136 = scmp.ne.s32.totalorder %s122, %s123
      %p137 = scmp.eq.s32.totalorder %s25, 7
      %p138 = por %p136, %p137
      %p140 = scmp.ne.s32.totalorder %s123, %s139
      %p141 = scmp.eq.s32.totalorder %s25, 0
      %p142 = por %p140, %p141
      %s143 = ssub.s32 %s26, %s52
      %s144 = ssub.s32 %s29, %s40
      %s145 = sor.u32 %s143, %s144
      %p146 = scmp.eq.s32.totalorder %s145, 0
      %s148 = sadd.s32 %s147, 1
      %s149 = scalar_select %p146, %s147, %s148
      %p152 = pneg %p146
      %p153 = scmp.eq.s32.totalorder %s19, 7
      %p154 = por %p152, %p153
      %p155 = scmp.ne.s32.totalorder %s147, %s150
      %p156 = scmp.eq.s32.totalorder %s19, 0
      %p157 = por %p155, %p156
      %p158 = scmp.ne.s32.totalorder %s147, %s150
      %p159 = scmp.eq.s32.totalorder %s24, 7
      %p160 = por %p158, %p159
      %p161 = scmp.ne.s32.totalorder %s150, %s151
      %p162 = scmp.eq.s32.totalorder %s24, 0
      %p163 = por %p161, %p162
      %p164 = scmp.ne.s32.totalorder %s150, %s151
      %p165 = scmp.eq.s32.totalorder %s25, 7
      %p166 = por %p164, %p165
      %p168 = scmp.ne.s32.totalorder %s151, %s167
      %p169 = scmp.eq.s32.totalorder %s25, 0
      %p170 = por %p168, %p169
      %s171 = ssub.s32 %s26, %s52
      %s172 = ssub.s32 %s27, %s48
      %s173 = sor.u32 %s171, %s172
      %s174 = ssub.s32 %s28, %s44
      %s175 = sor.u32 %s173, %s174
      %p176 = scmp.eq.s32.totalorder %s175, 0
      %s178 = sadd.s32 %s177, 1
      %s179 = scalar_select %p176, %s177, %s178
      %p182 = pneg %p176
      %p183 = scmp.eq.s32.totalorder %s19, 7
      %p184 = por %p182, %p183
      %p185 = scmp.ne.s32.totalorder %s177, %s180
      %p186 = scmp.eq.s32.totalorder %s19, 0
      %p187 = por %p185, %p186
      %p188 = scmp.ne.s32.totalorder %s177, %s180
      %p189 = scmp.eq.s32.totalorder %s24, 7
      %p190 = por %p188, %p189
      %p191 = scmp.ne.s32.totalorder %s180, %s181
      %p192 = scmp.eq.s32.totalorder %s24, 0
      %p193 = por %p191, %p192
      %p194 = scmp.ne.s32.totalorder %s180, %s181
      %p195 = scmp.eq.s32.totalorder %s25, 7
      %p196 = por %p194, %p195
      %p198 = scmp.ne.s32.totalorder %s181, %s197
      %p199 = scmp.eq.s32.totalorder %s25, 0
      %p200 = por %p198, %p199
      %p201 = scmp.le.s32.totalorder 1, %s19
      %p202 = scmp.lt.s32.totalorder %s19, 9
      %p203 = pnand %p201, %p202
      %p204 = pneg %p203
      // Predicated region
      $region9: #{tpu_custom_call.1} parent=5 // pred_check
        _
      $region10: #{tpu_custom_call.1} parent=5 // pred_check_branch
        %206 = sbr.rel (%p203) target = $region12
      $region11: #{tpu_custom_call.1} parent=5 // pred_region
        %s207 = ssub.s32 %s19, 1
      $region12: #{tpu_custom_call.1} parent=5 // pred_fallthru
        _
      %p208 = scmp.lt.s32.totalorder %s19, 8
      // Predicated region
      $region13: #{tpu_custom_call.1} parent=5 // pred_check
        %p209 = pneg %p208
      $region14: #{tpu_custom_call.1} parent=5 // pred_check_branch
        %211 = sbr.rel (%p209) target = $region16
      $region15: #{tpu_custom_call.1} parent=5 // pred_region
        // Predicated region
        $region17: #{tpu_custom_call.1} parent=15 // pred_check
          %p212 = pneg %p69
        $region18: #{tpu_custom_call.1} parent=15 // pred_check_branch
          %214 = sbr.rel (%p212) target = $region20
        $region19: #{tpu_custom_call.1} parent=15 // pred_region
          %s215 = sand.u32 %s59, 1
          %s216 = scalar_lea.sflag [#allocation6], %s215
          %s217 = sand.u32 %s59, 1
          %s218 = smul.addr %s217, 8
          %s219 = scalar_lea.vmem [#allocation5], %s218
          %s221 = ssub.s32 128, 128
          %222 = vsyncadd %s216, %s221
          %s223 = sadd.s32 %s28, %s27
          %s224 = smul.addr %s26, 4
          %s225 = sadd.s32 %s223, %s224
          %s226 = smul.addr %s225, 128
          %s227 = scalar_lea.hbm %s0, %s226
          %s229 = sshll.u32 %s219, 4
          %s230 = int_to_ptr.vmem [resolvable:$true] %s229
          %232 = dma.hbm_to_vmem [thread:$0]  %s227, 128, %s230, %s216
        $region20: #{tpu_custom_call.1} parent=15 // pred_fallthru
          _
        // Predicated region
        $region21: #{tpu_custom_call.1} parent=15 // pred_check
          %p233 = pneg %p99
        $region22: #{tpu_custom_call.1} parent=15 // pred_check_branch
          %235 = sbr.rel (%p233) target = $region24
        $region23: #{tpu_custom_call.1} parent=15 // pred_region
          %s236 = sand.u32 %s19, 1
          %s237 = scalar_lea.sflag [#allocation9], %s236
          %s238 = sand.u32 %s89, 1
          %s239 = smul.addr %s238, 8
          %s240 = scalar_lea.vmem [#allocation8], %s239
          %s242 = ssub.s32 128, 128
          %243 = vsyncadd %s237, %s242
          %s244 = sadd.s32 %s29, %s27
          %s245 = smul.addr %s26, 4
          %s246 = sadd.s32 %s244, %s245
          %s247 = smul.addr %s246, 128
          %s248 = scalar_lea.hbm %s1, %s247
          %s250 = sshll.u32 %s240, 4
          %s251 = int_to_ptr.vmem [resolvable:$true] %s250
          %253 = dma.hbm_to_vmem [thread:$0]  %s248, 128, %s251, %s237
        $region24: #{tpu_custom_call.1} parent=15 // pred_fallthru
          _
        // Predicated region
        $region25: #{tpu_custom_call.1} parent=15 // pred_check
          %p254 = pneg %p129
        $region26: #{tpu_custom_call.1} parent=15 // pred_check_branch
          %256 = sbr.rel (%p254) target = $region28
        $region27: #{tpu_custom_call.1} parent=15 // pred_region
          %s257 = sand.u32 %s19, 1
          %s258 = scalar_lea.sflag [#allocation9], %s257
          %s259 = sand.u32 %s119, 1
          %s260 = smul.addr %s259, 8
          %s261 = scalar_lea.vmem [#allocation10], %s260
          %s263 = ssub.s32 128, 128
          %264 = vsyncadd %s258, %s263
          %s265 = sadd.s32 %s29, %s27
          %s266 = smul.addr %s26, 4
          %s267 = sadd.s32 %s265, %s266
          %s268 = smul.addr %s267, 128
          %s269 = scalar_lea.hbm %s2, %s268
          %s271 = sshll.u32 %s261, 4
          %s272 = int_to_ptr.vmem [resolvable:$true] %s271
          %274 = dma.hbm_to_vmem [thread:$0]  %s269, 128, %s272, %s258
        $region28: #{tpu_custom_call.1} parent=15 // pred_fallthru
          _
        // Predicated region
        $region29: #{tpu_custom_call.1} parent=15 // pred_check
          %p275 = pneg %p157
        $region30: #{tpu_custom_call.1} parent=15 // pred_check_branch
          %277 = sbr.rel (%p275) target = $region32
        $region31: #{tpu_custom_call.1} parent=15 // pred_region
          %p278 = scmp.lt.s32.totalorder %s26, 1
          %s279 = scalar_select %p278, %s26, 1
          %p280 = scmp.lt.s32.totalorder %s29, 0
          %s281 = scalar_select %p280, %s29, 0
          %s282 = sadd.s32 %s281, %s279
          %s283 = scalar_lea.vmem %s3, %s282
        $region32: #{tpu_custom_call.1} parent=15 // pred_fallthru
          _
      $region16: #{tpu_custom_call.1} parent=5 // pred_fallthru
        _
      %p284 = scmp.le.s32.totalorder 1, %s19
      %p285 = scmp.lt.s32.totalorder %s19, 9
      %p286 = pnand %p284, %p285
      %p287 = pneg %p286
      // Predicated region
      $region33: #{tpu_custom_call.1} parent=5 // pred_check
        _
      $region34: #{tpu_custom_call.1} parent=5 // pred_check_branch
        %289 = sbr.rel (%p286) target = $region36
      $region35: #{tpu_custom_call.1} parent=5 // pred_region
        %s290 = ssub.s32 %s19, 1
        %s291 = sand.u32 %s62, 1
        %s292 = scalar_lea.sflag [#allocation6], %s291
        %s293 = sand.u32 %s62, 1
        %s294 = smul.addr %s293, 8
        %s295 = scalar_lea.vmem [#allocation5], %s294
        // Predicated region
        $region37: #{tpu_custom_call.1} parent=35 // pred_check
          %p296 = pneg %p75
        $region38: #{tpu_custom_call.1} parent=35 // pred_check_branch
          %298 = sbr.rel (%p296) target = $region40
        $region39: #{tpu_custom_call.1} parent=35 // pred_region
          %299 = dma.done %s292, 128
        $region40: #{tpu_custom_call.1} parent=35 // pred_fallthru
          _
        %s300 = sand.u32 %s24, 1
        %s301 = scalar_lea.sflag [#allocation9], %s300
        %s302 = sand.u32 %s92, 1
        %s303 = smul.addr %s302, 8
        %s304 = scalar_lea.vmem [#allocation8], %s303
        // Predicated region
        $region41: #{tpu_custom_call.1} parent=35 // pred_check
          %p305 = pneg %p105
        $region42: #{tpu_custom_call.1} parent=35 // pred_check_branch
          %307 = sbr.rel (%p305) target = $region44
        $region43: #{tpu_custom_call.1} parent=35 // pred_region
          %308 = dma.done %s301, 128
        $region44: #{tpu_custom_call.1} parent=35 // pred_fallthru
          _
        %s309 = sand.u32 %s24, 1
        %s310 = scalar_lea.sflag [#allocation9], %s309
        %s311 = sand.u32 %s122, 1
        %s312 = smul.addr %s311, 8
        %s313 = scalar_lea.vmem [#allocation10], %s312
        // Predicated region
        $region45: #{tpu_custom_call.1} parent=35 // pred_check
          %p314 = pneg %p135
        $region46: #{tpu_custom_call.1} parent=35 // pred_check_branch
          %316 = sbr.rel (%p314) target = $region48
        $region47: #{tpu_custom_call.1} parent=35 // pred_region
          %317 = dma.done %s310, 128
        $region48: #{tpu_custom_call.1} parent=35 // pred_fallthru
          _
        %s318 = sand.u32 %s62, 1
        %s319 = scalar_lea.sflag [#allocation6], %s318
        %s320 = sand.u32 %s62, 1
        %s321 = smul.addr %s320, 8
        %s322 = scalar_lea.vmem [#allocation5], %s321
        %p323 = pneg %p75
        %p324 = pneg %p72
        %s325 = sand.u32 %s24, 1
        %s326 = scalar_lea.sflag [#allocation9], %s325
        %s327 = sand.u32 %s92, 1
        %s328 = smul.addr %s327, 8
        %s329 = scalar_lea.vmem [#allocation8], %s328
        %p330 = pneg %p105
        %p331 = pneg %p102
        %s332 = sand.u32 %s24, 1
        %s333 = scalar_lea.sflag [#allocation9], %s332
        %s334 = sand.u32 %s122, 1
        %s335 = smul.addr %s334, 8
        %s336 = scalar_lea.vmem [#allocation10], %s335
        %p337 = pneg %p135
        %p338 = pneg %p132
        %p339 = scmp.lt.s32.totalorder %s30, 1
        %s340 = scalar_select %p339, %s30, 1
        %p341 = scmp.lt.s32.totalorder %s33, 0
        %s342 = scalar_select %p341, %s33, 0
        %s343 = sadd.s32 %s342, %s340
        %s344 = scalar_lea.vmem %s3, %s343
        %p345 = pneg %p163
        %p346 = pneg %p160
        %p347 = pneg %p193
        %p348 = pneg %p190
        %s349 = sand.u32 %s180, 1
        %s350 = scalar_lea.sflag [#allocation7], %s349
        %s351 = sand.u32 %s180, 1
        %s352 = smul.addr %s351, 8
        %s353 = scalar_lea.vmem [#allocation11], %s352
        %p354 = scmp.lt.s32.totalorder %s30, 1
        %s355 = scalar_select %p354, %s30, 1
        %p356 = scmp.lt.s32.totalorder %s33, 0
        %s357 = scalar_select %p356, %s33, 0
        %s358 = sadd.s32 %s357, %s355
        %s359 = scalar_lea.vmem %s3, %s358
        %p360 = scmp.eq.s32.totalorder %s33, 0
        // Predicated region
        $region49: #{tpu_custom_call.1} parent=35 // pred_check
          %p361 = pneg %p360
        $region50: #{tpu_custom_call.1} parent=35 // pred_check_branch
          %363 = sbr.rel (%p361) target = $region52
        $region51: #{tpu_custom_call.1} parent=35 // pred_region
          %vm364 = vcmask 7168
          %365 = vst.msk [vmem:[#allocation2] sm:$0xff] %vm364, -inf
          %366 = vst.msk [vmem:[#allocation3] sm:$0xff] %vm364, 0.0
          %vm367 = vcmask 261120
          %368 = vst.msk [vmem:[#allocation4] sm:$0xff] %vm367, 0.0
        $region52: #{tpu_custom_call.1} parent=35 // pred_fallthru
          _
        %s369 = sadd.s32 %s33, 1
        %s370 = smul.u32 %s369, 8
        %s371 = ssub.s32 %s370, 1
        %s372 = smul.u32 %s32, 8
        %s373 = ssub.s32 %s371, %s372
        %p374 = scmp.le.s32.totalorder %s373, 0
        %s375 = smul.u32 %s33, 8
        %s376 = sadd.s32 %s372, 7
        %s377 = ssub.s32 %s375, %s376
        %p378 = scmp.le.s32.totalorder %s377, 0
        %p379 = scmp.gt.s32.totalorder %s373, 0
        %p380 = pnand %p378, %p379
        %p381 = pneg %p380
        // Predicated region
        $region53: #{tpu_custom_call.1} parent=35 // pred_check
          _
        $region54: #{tpu_custom_call.1} parent=35 // pred_check_branch
          %383 = sbr.rel (%p380) target = $region56
        $region55: #{tpu_custom_call.1} parent=35 // pred_region
          %v384 = vld [vmem:[%s295] sm:$0xff]
          %v385 = vmul.f32 %v384, 0.17677669
          %v386 = vld [vmem:[%s304] sm:$0xff]
          %vm387 = vcmask 261120
          %v389 = vsel %vm387, %v385, 0
          %v392 = vsel %vm387, %v386, 0
          %394 = vmatprep.subr.mxu0 0.0
          %395 = vmatpush1.xpose.msra.mxu0 %v392
          %396 = vmatprep.subr.mxu0 0.0
          %397 = vmatpush1.xpose.msra.mxu0 0.0
          %398 = vmatprep.subr.mxu0 0.0
          %399 = vmatpush1.xpose.msra.mxu0 0.0
          %400 = vmatprep.subr.mxu0 0.0
          %401 = vmatpush1.xpose.msra.mxu0 0.0
          %402 = vmatprep.subr.mxu0 0.0
          %403 = vmatpush1.xpose.msra.mxu0 0.0
          %404 = vmatprep.subr.mxu0 0.0
          %405 = vmatpush1.xpose.msra.mxu0 0.0
          %406 = vmatprep.subr.mxu0 0.0
          %407 = vmatpush1.xpose.msra.mxu0 0.0
          %408 = vmatprep.subr.mxu0 0.0
          %409 = vmatpush1.xpose.msra.mxu0 0.0
          %410 = vmatprep.subr.mxu0 0.0
          %411 = vmatpush1.xpose.msra.mxu0 0.0
          %412 = vmatprep.subr.mxu0 0.0
          %413 = vmatpush1.xpose.msra.mxu0 0.0
          %414 = vmatprep.subr.mxu0 0.0
          %415 = vmatpush1.xpose.msra.mxu0 0.0
          %416 = vmatprep.subr.mxu0 0.0
          %417 = vmatpush1.xpose.msra.mxu0 0.0
          %418 = vmatprep.subr.mxu0 0.0
          %419 = vmatpush1.xpose.msra.mxu0 0.0
          %420 = vmatprep.subr.mxu0 0.0
          %421 = vmatpush1.xpose.msra.mxu0 0.0
          %422 = vmatprep.subr.mxu0 0.0
          %423 = vmatpush1.xpose.msra.mxu0 0.0
          %424 = vmatprep.subr.mxu0 0.0
          %425 = vmatpush1.xpose.msra.mxu0 0.0
          %426 = vmatprep.subr.mxu0 0.0
          %427 = vmatpush1.xpose.msra.mxu0 0.0
          %428 = vmatprep.subr.mxu0 0.0
          %429 = vmatpush1.xpose.msra.mxu0 0.0
          %430 = vmatprep.subr.mxu0 0.0
          %431 = vmatpush1.xpose.msra.mxu0 0.0
          %432 = vmatprep.subr.mxu0 0.0
          %433 = vmatpush1.xpose.msra.mxu0 0.0
          %434 = vmatprep.subr.mxu0 0.0
          %435 = vmatpush1.xpose.msra.mxu0 0.0
          %436 = vmatprep.subr.mxu0 0.0
          %437 = vmatpush1.xpose.msra.mxu0 0.0
          %438 = vmatprep.subr.mxu0 0.0
          %439 = vmatpush1.xpose.msra.mxu0 0.0
          %440 = vmatprep.subr.mxu0 0.0
          %441 = vmatpush1.xpose.msra.mxu0 0.0
          %442 = vmatprep.subr.mxu0 0.0
          %443 = vmatpush1.xpose.msra.mxu0 0.0
          %444 = vmatprep.subr.mxu0 0.0
          %445 = vmatpush1.xpose.msra.mxu0 0.0
          %446 = vmatprep.subr.mxu0 0.0
          %447 = vmatpush1.xpose.msra.mxu0 0.0
          %448 = vmatprep.subr.mxu0 0.0
          %449 = vmatpush1.xpose.msra.mxu0 0.0
          %450 = vmatprep.subr.mxu0 0.0
          %451 = vmatpush1.xpose.msra.mxu0 0.0
          %452 = vmatprep.subr.mxu0 0.0
          %453 = vmatpush1.xpose.msra.mxu0 0.0
          %454 = vmatprep.subr.mxu0 0.0
          %455 = vmatpush1.xpose.msra.mxu0 0.0
          %456 = vmatprep.subr.mxu0 0.0
          %457 = vmatpush1.xpose.msra.mxu0 0.0
          %458 = vmatprep.mubr.f32.mxu0 0.0
          %459 = vmatmul.mubr.f32.gmra.mrb[0].mxu0 %v389
          %v460 = vpop.f32.mrb[0].mxu0
          %v461 = vadd.f32 0.0, %v460
          %v462 = vpop.f32.mrb[0].mxu0
          %463 = vdwg.mxu0
          %v464 = vlaneseq
          %v465 = vshrl.u32 %v464, 7
          %v466 = vstv %s372
          %v467 = vadd.s32 %v465, %v466
          %v468 = vlaneseq
          %v469 = vand.u32 %v468, 127
          %v470 = vstv %s375
          %v471 = vadd.s32 %v469, %v470
          %v472 = vsub.s32 %v471, %v467
          %vm473 = vcmp.gt.s32.totalorder %v472, 0
          %v474 = vsel %vm473, -3.4028235e+38, %v461
          %v475 = vld [vmem:[%s359] sm:$0x1]
          %vm476 = vcmp.ne.s32.totalorder %v475, 0
          %v477 = vsel %vm476, 1, 0
          %v478 = vlaneseq
          %v479 = vshrl.u32 %v478, 7
          %v480 = vsub.s32 0, %v479
          %v481 = vrot.slane %v477, %v480
          %vm482 = vcmp.eq.s32.totalorder %v481, 1
          %v483 = vsel %vm482, %v474, -3.4028235e+38
          %v484 = vld [vmem:[#allocation2] sm:$0xff]
          %vm485 = vcmask 64512
          %v486 = vsel %vm485, %v483, -inf
          %487 = vmax.xlane.f32.xlu0 %v486
          %v488 = vpop.xlane.xlu0 %487
          %v489 = vmax.f32 %v484, %v488
          %v490 = vsub.f32 %v484, %v489
          %v491 = vmul.f32 %v490, 1.442695
          %v492 = vpow.pop %v491
          %494 = vset.pattern.permute.xlu0 0
          %495 = vperm.xlu0 %494, %v489
          %v496 = vpop.permute.xlu0 %495
          %v498 = vsub.f32 %v483, %v496
          %v499 = vmul.f32 %v498, 1.442695
          %v500 = vpow.pop %v499
          %v501 = vld [vmem:[#allocation3] sm:$0xff]
          %v502 = vmul.f32 %v492, %v501
          %v503 = vsel %vm485, %v500, 0.0
          %504 = vadd.xlane.f32.xlu0 %v503
          %v505 = vpop.xlane.xlu0 %504
          %v506 = vadd.f32 %v502, %v505
          %vm507 = vcmask 7168
          %508 = vst.msk [vmem:[#allocation3] sm:$0xff] %vm507, %v506
          %v509 = vld [vmem:[#allocation4] sm:$0xff]
          %511 = vset.pattern.permute.xlu0 0
          %512 = vperm.xlu0 %511, %v492
          %v513 = vpop.permute.xlu0 %512
          %v515 = vmul.f32 %v513, %v509
          %v516 = vld [vmem:[%s313] sm:$0xff]
          %v518 = vsel %vm485, %v500, 0
          %520 = vmatprep.subr.mxu0 0.0
          %521 = vmatpush1.msra.mxu0 %v516
          %522 = vmatprep.subr.mxu0 0.0
          %523 = vmatpush1.msra.mxu0 0.0
          %524 = vmatprep.subr.mxu0 0.0
          %525 = vmatpush1.msra.mxu0 0.0
          %526 = vmatprep.subr.mxu0 0.0
          %527 = vmatpush1.msra.mxu0 0.0
          %528 = vmatprep.subr.mxu0 0.0
          %529 = vmatpush1.msra.mxu0 0.0
          %530 = vmatprep.subr.mxu0 0.0
          %531 = vmatpush1.msra.mxu0 0.0
          %532 = vmatprep.subr.mxu0 0.0
          %533 = vmatpush1.msra.mxu0 0.0
          %534 = vmatprep.subr.mxu0 0.0
          %535 = vmatpush1.msra.mxu0 0.0
          %536 = vmatprep.subr.mxu0 0.0
          %537 = vmatpush1.msra.mxu0 0.0
          %538 = vmatprep.subr.mxu0 0.0
          %539 = vmatpush1.msra.mxu0 0.0
          %540 = vmatprep.subr.mxu0 0.0
          %541 = vmatpush1.msra.mxu0 0.0
          %542 = vmatprep.subr.mxu0 0.0
          %543 = vmatpush1.msra.mxu0 0.0
          %544 = vmatprep.subr.mxu0 0.0
          %545 = vmatpush1.msra.mxu0 0.0
          %546 = vmatprep.subr.mxu0 0.0
          %547 = vmatpush1.msra.mxu0 0.0
          %548 = vmatprep.subr.mxu0 0.0
          %549 = vmatpush1.msra.mxu0 0.0
          %550 = vmatprep.subr.mxu0 0.0
          %551 = vmatpush1.msra.mxu0 0.0
          %552 = vmatprep.subr.mxu0 0.0
          %553 = vmatpush1.msra.mxu0 0.0
          %554 = vmatprep.subr.mxu0 0.0
          %555 = vmatpush1.msra.mxu0 0.0
          %556 = vmatprep.subr.mxu0 0.0
          %557 = vmatpush1.msra.mxu0 0.0
          %558 = vmatprep.subr.mxu0 0.0
          %559 = vmatpush1.msra.mxu0 0.0
          %560 = vmatprep.subr.mxu0 0.0
          %561 = vmatpush1.msra.mxu0 0.0
          %562 = vmatprep.subr.mxu0 0.0
          %563 = vmatpush1.msra.mxu0 0.0
          %564 = vmatprep.subr.mxu0 0.0
          %565 = vmatpush1.msra.mxu0 0.0
          %566 = vmatprep.subr.mxu0 0.0
          %567 = vmatpush1.msra.mxu0 0.0
          %568 = vmatprep.subr.mxu0 0.0
          %569 = vmatpush1.msra.mxu0 0.0
          %570 = vmatprep.subr.mxu0 0.0
          %571 = vmatpush1.msra.mxu0 0.0
          %572 = vmatprep.subr.mxu0 0.0
          %573 = vmatpush1.msra.mxu0 0.0
          %574 = vmatprep.subr.mxu0 0.0
          %575 = vmatpush1.msra.mxu0 0.0
          %576 = vmatprep.subr.mxu0 0.0
          %577 = vmatpush1.msra.mxu0 0.0
          %578 = vmatprep.subr.mxu0 0.0
          %579 = vmatpush1.msra.mxu0 0.0
          %580 = vmatprep.subr.mxu0 0.0
          %581 = vmatpush1.msra.mxu0 0.0
          %582 = vmatprep.subr.mxu0 0.0
          %583 = vmatpush1.msra.mxu0 0.0
          %584 = vmatprep.mubr.f32.mxu0 0.0
          %585 = vmatmul.mubr.f32.gmra.mrb[0].mxu0 %v518
          %v586 = vpop.f32.mrb[0].mxu0
          %v587 = vadd.f32 0.0, %v586
          %v588 = vpop.f32.mrb[0].mxu0
          %589 = vdwg.mxu0
          %v590 = vadd.f32 %v515, %v587
          %591 = vst.msk [vmem:[#allocation4] sm:$0xff] %vm387, %v590
          %592 = vst.msk [vmem:[#allocation2] sm:$0xff] %vm507, %v489
        $region56: #{tpu_custom_call.1} parent=35 // pred_fallthru
          _
        // Predicated region
        $region57: #{tpu_custom_call.1} parent=35 // pred_check
          %p593 = pneg %p374
        $region58: #{tpu_custom_call.1} parent=35 // pred_check_branch
          %595 = sbr.rel (%p593) target = $region60
        $region59: #{tpu_custom_call.1} parent=35 // pred_region
          %v596 = vld [vmem:[%s295] sm:$0xff]
          %v597 = vmul.f32 %v596, 0.17677669
          %v598 = vld [vmem:[%s304] sm:$0xff]
          %vm599 = vcmask 261120
          %v601 = vsel %vm599, %v597, 0
          %v604 = vsel %vm599, %v598, 0
          %606 = vmatprep.subr.mxu0 0.0
          %607 = vmatpush1.xpose.msra.mxu0 %v604
          %608 = vmatprep.subr.mxu0 0.0
          %609 = vmatpush1.xpose.msra.mxu0 0.0
          %610 = vmatprep.subr.mxu0 0.0
          %611 = vmatpush1.xpose.msra.mxu0 0.0
          %612 = vmatprep.subr.mxu0 0.0
          %613 = vmatpush1.xpose.msra.mxu0 0.0
          %614 = vmatprep.subr.mxu0 0.0
          %615 = vmatpush1.xpose.msra.mxu0 0.0
          %616 = vmatprep.subr.mxu0 0.0
          %617 = vmatpush1.xpose.msra.mxu0 0.0
          %618 = vmatprep.subr.mxu0 0.0
          %619 = vmatpush1.xpose.msra.mxu0 0.0
          %620 = vmatprep.subr.mxu0 0.0
          %621 = vmatpush1.xpose.msra.mxu0 0.0
          %622 = vmatprep.subr.mxu0 0.0
          %623 = vmatpush1.xpose.msra.mxu0 0.0
          %624 = vmatprep.subr.mxu0 0.0
          %625 = vmatpush1.xpose.msra.mxu0 0.0
          %626 = vmatprep.subr.mxu0 0.0
          %627 = vmatpush1.xpose.msra.mxu0 0.0
          %628 = vmatprep.subr.mxu0 0.0
          %629 = vmatpush1.xpose.msra.mxu0 0.0
          %630 = vmatprep.subr.mxu0 0.0
          %631 = vmatpush1.xpose.msra.mxu0 0.0
          %632 = vmatprep.subr.mxu0 0.0
          %633 = vmatpush1.xpose.msra.mxu0 0.0
          %634 = vmatprep.subr.mxu0 0.0
          %635 = vmatpush1.xpose.msra.mxu0 0.0
          %636 = vmatprep.subr.mxu0 0.0
          %637 = vmatpush1.xpose.msra.mxu0 0.0
          %638 = vmatprep.subr.mxu0 0.0
          %639 = vmatpush1.xpose.msra.mxu0 0.0
          %640 = vmatprep.subr.mxu0 0.0
          %641 = vmatpush1.xpose.msra.mxu0 0.0
          %642 = vmatprep.subr.mxu0 0.0
          %643 = vmatpush1.xpose.msra.mxu0 0.0
          %644 = vmatprep.subr.mxu0 0.0
          %645 = vmatpush1.xpose.msra.mxu0 0.0
          %646 = vmatprep.subr.mxu0 0.0
          %647 = vmatpush1.xpose.msra.mxu0 0.0
          %648 = vmatprep.subr.mxu0 0.0
          %649 = vmatpush1.xpose.msra.mxu0 0.0
          %650 = vmatprep.subr.mxu0 0.0
          %651 = vmatpush1.xpose.msra.mxu0 0.0
          %652 = vmatprep.subr.mxu0 0.0
          %653 = vmatpush1.xpose.msra.mxu0 0.0
          %654 = vmatprep.subr.mxu0 0.0
          %655 = vmatpush1.xpose.msra.mxu0 0.0
          %656 = vmatprep.subr.mxu0 0.0
          %657 = vmatpush1.xpose.msra.mxu0 0.0
          %658 = vmatprep.subr.mxu0 0.0
          %659 = vmatpush1.xpose.msra.mxu0 0.0
          %660 = vmatprep.subr.mxu0 0.0
          %661 = vmatpush1.xpose.msra.mxu0 0.0
          %662 = vmatprep.subr.mxu0 0.0
          %663 = vmatpush1.xpose.msra.mxu0 0.0
          %664 = vmatprep.subr.mxu0 0.0
          %665 = vmatpush1.xpose.msra.mxu0 0.0
          %666 = vmatprep.subr.mxu0 0.0
          %667 = vmatpush1.xpose.msra.mxu0 0.0
          %668 = vmatprep.subr.mxu0 0.0
          %669 = vmatpush1.xpose.msra.mxu0 0.0
          %670 = vmatprep.mubr.f32.mxu0 0.0
          %671 = vmatmul.mubr.f32.gmra.mrb[0].mxu0 %v601
          %v672 = vpop.f32.mrb[0].mxu0
          %v673 = vadd.f32 0.0, %v672
          %v674 = vpop.f32.mrb[0].mxu0
          %675 = vdwg.mxu0
          %v676 = vld [vmem:[%s359] sm:$0x1]
          %vm677 = vcmp.ne.s32.totalorder %v676, 0
          %v678 = vsel %vm677, 1, 0
          %v679 = vlaneseq
          %v680 = vshrl.u32 %v679, 7
          %v681 = vsub.s32 0, %v680
          %v682 = vrot.slane %v678, %v681
          %vm683 = vcmp.eq.s32.totalorder %v682, 1
          %v684 = vsel %vm683, %v673, -3.4028235e+38
          %v685 = vld [vmem:[#allocation2] sm:$0xff]
          %vm686 = vcmask 64512
          %v687 = vsel %vm686, %v684, -inf
          %688 = vmax.xlane.f32.xlu0 %v687
          %v689 = vpop.xlane.xlu0 %688
          %v690 = vmax.f32 %v685, %v689
          %v691 = vsub.f32 %v685, %v690
          %v692 = vmul.f32 %v691, 1.442695
          %v693 = vpow.pop %v692
          %695 = vset.pattern.permute.xlu0 0
          %696 = vperm.xlu0 %695, %v690
          %v697 = vpop.permute.xlu0 %696
          %v699 = vsub.f32 %v684, %v697
          %v700 = vmul.f32 %v699, 1.442695
          %v701 = vpow.pop %v700
          %v702 = vld [vmem:[#allocation3] sm:$0xff]
          %v703 = vmul.f32 %v693, %v702
          %v704 = vsel %vm686, %v701, 0.0
          %705 = vadd.xlane.f32.xlu0 %v704
          %v706 = vpop.xlane.xlu0 %705
          %v707 = vadd.f32 %v703, %v706
          %vm708 = vcmask 7168
          %709 = vst.msk [vmem:[#allocation3] sm:$0xff] %vm708, %v707
          %v710 = vld [vmem:[#allocation4] sm:$0xff]
          %712 = vset.pattern.permute.xlu0 0
          %713 = vperm.xlu0 %712, %v693
          %v714 = vpop.permute.xlu0 %713
          %v716 = vmul.f32 %v714, %v710
          %v717 = vld [vmem:[%s313] sm:$0xff]
          %v719 = vsel %vm686, %v701, 0
          %721 = vmatprep.subr.mxu0 0.0
          %722 = vmatpush1.msra.mxu0 %v717
          %723 = vmatprep.subr.mxu0 0.0
          %724 = vmatpush1.msra.mxu0 0.0
          %725 = vmatprep.subr.mxu0 0.0
          %726 = vmatpush1.msra.mxu0 0.0
          %727 = vmatprep.subr.mxu0 0.0
          %728 = vmatpush1.msra.mxu0 0.0
          %729 = vmatprep.subr.mxu0 0.0
          %730 = vmatpush1.msra.mxu0 0.0
          %731 = vmatprep.subr.mxu0 0.0
          %732 = vmatpush1.msra.mxu0 0.0
          %733 = vmatprep.subr.mxu0 0.0
          %734 = vmatpush1.msra.mxu0 0.0
          %735 = vmatprep.subr.mxu0 0.0
          %736 = vmatpush1.msra.mxu0 0.0
          %737 = vmatprep.subr.mxu0 0.0
          %738 = vmatpush1.msra.mxu0 0.0
          %739 = vmatprep.subr.mxu0 0.0
          %740 = vmatpush1.msra.mxu0 0.0
          %741 = vmatprep.subr.mxu0 0.0
          %742 = vmatpush1.msra.mxu0 0.0
          %743 = vmatprep.subr.mxu0 0.0
          %744 = vmatpush1.msra.mxu0 0.0
          %745 = vmatprep.subr.mxu0 0.0
          %746 = vmatpush1.msra.mxu0 0.0
          %747 = vmatprep.subr.mxu0 0.0
          %748 = vmatpush1.msra.mxu0 0.0
          %749 = vmatprep.subr.mxu0 0.0
          %750 = vmatpush1.msra.mxu0 0.0
          %751 = vmatprep.subr.mxu0 0.0
          %752 = vmatpush1.msra.mxu0 0.0
          %753 = vmatprep.subr.mxu0 0.0
          %754 = vmatpush1.msra.mxu0 0.0
          %755 = vmatprep.subr.mxu0 0.0
          %756 = vmatpush1.msra.mxu0 0.0
          %757 = vmatprep.subr.mxu0 0.0
          %758 = vmatpush1.msra.mxu0 0.0
          %759 = vmatprep.subr.mxu0 0.0
          %760 = vmatpush1.msra.mxu0 0.0
          %761 = vmatprep.subr.mxu0 0.0
          %762 = vmatpush1.msra.mxu0 0.0
          %763 = vmatprep.subr.mxu0 0.0
          %764 = vmatpush1.msra.mxu0 0.0
          %765 = vmatprep.subr.mxu0 0.0
          %766 = vmatpush1.msra.mxu0 0.0
          %767 = vmatprep.subr.mxu0 0.0
          %768 = vmatpush1.msra.mxu0 0.0
          %769 = vmatprep.subr.mxu0 0.0
          %770 = vmatpush1.msra.mxu0 0.0
          %771 = vmatprep.subr.mxu0 0.0
          %772 = vmatpush1.msra.mxu0 0.0
          %773 = vmatprep.subr.mxu0 0.0
          %774 = vmatpush1.msra.mxu0 0.0
          %775 = vmatprep.subr.mxu0 0.0
          %776 = vmatpush1.msra.mxu0 0.0
          %777 = vmatprep.subr.mxu0 0.0
          %778 = vmatpush1.msra.mxu0 0.0
          %779 = vmatprep.subr.mxu0 0.0
          %780 = vmatpush1.msra.mxu0 0.0
          %781 = vmatprep.subr.mxu0 0.0
          %782 = vmatpush1.msra.mxu0 0.0
          %783 = vmatprep.subr.mxu0 0.0
          %784 = vmatpush1.msra.mxu0 0.0
          %785 = vmatprep.mubr.f32.mxu0 0.0
          %786 = vmatmul.mubr.f32.gmra.mrb[0].mxu0 %v719
          %v787 = vpop.f32.mrb[0].mxu0
          %v788 = vadd.f32 0.0, %v787
          %v789 = vpop.f32.mrb[0].mxu0
          %790 = vdwg.mxu0
          %v791 = vadd.f32 %v716, %v788
          %792 = vst.msk [vmem:[#allocation4] sm:$0xff] %vm599, %v791
          %793 = vst.msk [vmem:[#allocation2] sm:$0xff] %vm708, %v690
        $region60: #{tpu_custom_call.1} parent=35 // pred_fallthru
          _
        // Predicated region
        $region61: #{tpu_custom_call.1} parent=35 // pred_check
          %p794 = pneg %p360
        $region62: #{tpu_custom_call.1} parent=35 // pred_check_branch
          %796 = sbr.rel (%p794) target = $region64
        $region63: #{tpu_custom_call.1} parent=35 // pred_region
          %v797 = vld [vmem:[#allocation3] sm:$0xff]
          %v798 = vrcp.pop %v797
          %v799 = vld [vmem:[#allocation4] sm:$0xff]
          %801 = vset.pattern.permute.xlu0 0
          %802 = vperm.xlu0 %801, %v798
          %v803 = vpop.permute.xlu0 %802
          %v805 = vmul.f32 %v799, %v803
          %vm806 = vcmask 261120
          %807 = vst.msk [vmem:[%s353] sm:$0xff] %vm806, %v805
        $region64: #{tpu_custom_call.1} parent=35 // pred_fallthru
          _
        %s808 = sand.u32 %s180, 1
        %s809 = scalar_lea.sflag [#allocation7], %s808
        %s810 = sand.u32 %s180, 1
        %s811 = smul.addr %s810, 8
        %s812 = scalar_lea.vmem [#allocation11], %s811
        // Predicated region
        $region65: #{tpu_custom_call.1} parent=35 // pred_check
          %p813 = pneg %p190
        $region66: #{tpu_custom_call.1} parent=35 // pred_check_branch
          %815 = sbr.rel (%p813) target = $region68
        $region67: #{tpu_custom_call.1} parent=35 // pred_region
          %s817 = ssub.s32 128, 128
          %818 = vsyncadd %s809, %s817
          %s819 = sadd.s32 %s32, %s31
          %s820 = smul.addr %s30, 4
          %s821 = sadd.s32 %s819, %s820
          %s822 = smul.addr %s821, 128
          %s823 = scalar_lea.hbm %s4, %s822
          %s825 = sshll.u32 %s812, 4
          %s826 = int_to_ptr.vmem [resolvable:$true] %s825
          %828 = dma.vmem_to_hbm [thread:$0]  %s826, 128, %s823, %s809
        $region68: #{tpu_custom_call.1} parent=35 // pred_fallthru
          _
      $region36: #{tpu_custom_call.1} parent=5 // pred_fallthru
        _
      %p829 = scmp.le.s32.totalorder 2, %s19
      // Predicated region
      $region69: #{tpu_custom_call.1} parent=5 // pred_check
        %p830 = pneg %p829
      $region70: #{tpu_custom_call.1} parent=5 // pred_check_branch
        %832 = sbr.rel (%p830) target = $region72
      $region71: #{tpu_custom_call.1} parent=5 // pred_region
        %s833 = ssub.s32 %s19, 2
        // Predicated region
        $region73: #{tpu_custom_call.1} parent=71 // pred_check
          %p834 = pneg %p196
        $region74: #{tpu_custom_call.1} parent=71 // pred_check_branch
          %836 = sbr.rel (%p834) target = $region76
        $region75: #{tpu_custom_call.1} parent=71 // pred_region
          %s837 = sand.u32 %s181, 1
          %s838 = scalar_lea.sflag [#allocation7], %s837
          %s839 = sand.u32 %s181, 1
          %s840 = smul.addr %s839, 8
          %s841 = scalar_lea.vmem [#allocation11], %s840
          %842 = dma.done %s838, 128
        $region76: #{tpu_custom_call.1} parent=71 // pred_fallthru
          _
      $region72: #{tpu_custom_call.1} parent=5 // pred_fallthru
        _
    $region6: #{tpu_custom_call.1} parent=1 // loop_footer
      %s23 = sadd.s32 1, %s19
    $region7: #{tpu_custom_call.1} parent=1 // loop_footer_branch
      %18 = sbr.rel target = $region3
    $region8: #{tpu_custom_call.1} parent=1 // loop_exit
      _
    %843 = vsyncpa [#allocation6], 1
    %s844 = scalar_lea.sflag [#allocation6], 1
    %845 = vsyncpa %s844, 1
    %846 = vsyncpa [#allocation9], 1
    %s847 = scalar_lea.sflag [#allocation9], 1
    %848 = vsyncpa %s847, 1
    %849 = vsyncpa [#allocation7], 1
    %s850 = scalar_lea.sflag [#allocation7], 1
    %851 = vsyncpa %s850, 1

</llo_original>
